<compile_context>
chip_gen: v6e
topology: v6e:2x2x1
jax: 0.10.0
libtpu: 0.0.40
codegen_flags: <defaults>
</compile_context>

<pallas_src>
import math
import functools

import jax
import jax.numpy as jnp
from jax import lax
from jax.experimental import pallas as pl
from jax.experimental.pallas import tpu as pltpu
import numpy as np

HALF_LOG_2PI = 0.5 * math.log(2.0 * math.pi)


def vi_classifier_kernel(bx, bw, bz, by, dx,
                         # inputs
                         x_ref, px_mu_ref, px_sig_ref,
                         w_ref, pw_mu_ref, pw_sig_ref, qw_mu_ref, qw_sig_ref,
                         z_ref, pz_mu_ref, pz_sig_ref, qz_mu_ref, qz_sig_ref,
                         y_ref, qy_logits_ref,
                         # output: packed diagnostics, (5, batch_tile)
                         diag_ref):
    """One grid step processes a (batch_tile, ...) slice of every tensor.

    Packed output rows: 0: m, 1: log_px, 2: kl_w, 3: kl_z, 4: log_qy.
    loss = mean(row 0) is taken in the wrapper so the grid stays parallel.
    """

    def normal_core(v, mu, sigma):
        # sum_d [ -0.5*((v-mu)/sigma)^2 - log(sigma) ].
        # The -D/2*log(2*pi) constant is applied outside the reduction (and
        # cancels exactly in the KL terms), saving per-element VPU work.
        zs = (v - mu) / sigma
        s1 = jnp.sum(zs * zs, axis=-1, keepdims=True)
        s2 = jnp.sum(jnp.log(sigma), axis=-1, keepdims=True)
        return -0.5 * s1 - s2

    log_px = (normal_core(x_ref[...], px_mu_ref[...], px_sig_ref[...])
              - jnp.float32(dx * HALF_LOG_2PI))

    w = w_ref[...]
    kl_w = (normal_core(w, qw_mu_ref[...], qw_sig_ref[...])
            - normal_core(w, pw_mu_ref[...], pw_sig_ref[...]))

    z = z_ref[...]
    kl_z = (normal_core(z, qz_mu_ref[...], qz_sig_ref[...])
            - normal_core(z, pz_mu_ref[...], pz_sig_ref[...]))

    # ---- Categorical log_prob(y): logits[y] - logsumexp(logits) ----
    # The class axis equals the full array dim (no blocking), so only the
    # C valid lanes participate in the max / exp-sum.
    logits = qy_logits_ref[...]                       # (TB, C)
    lmax = jnp.max(logits, axis=-1, keepdims=True)
    lse = lmax + jnp.log(jnp.sum(jnp.exp(logits - lmax), axis=-1, keepdims=True))
    cls_ids = lax.broadcasted_iota(jnp.int32, logits.shape, 1)
    onehot = (cls_ids == y_ref[...]).astype(jnp.float32)     # y_ref is (TB, 1)
    log_qy = jnp.sum(onehot * logits, axis=-1, keepdims=True) - lse

    # ---- weighted objective ----
    m = -bx * log_px + bw * kl_w + bz * kl_z - by * log_qy

    # Pack the five per-sample column vectors into one lane-dense block:
    # (TB, 5) -> transpose once (XLU) -> (5, TB), single unmasked writeback.
    packed = jnp.concatenate([m, log_px, kl_w, kl_z, log_qy], axis=1)  # (TB, 5)
    diag_ref[...] = packed.T                                           # (5, TB)


def _choose_batch_tile(batch):
    """Whole batch in one step when small; otherwise a 128-multiple tile."""
    if batch <= 512:
        return batch
    for t in (512, 384, 256, 128):
        if batch % t == 0:
            return t
    return batch  # fallback: single grid step


def vi_classifier_loss(outputs, x_flat, y, *, bx, bw, bz, by, batch_tile=None):
    """outputs: dict of distribution params and samples (see __main__)."""
    B, Dx = x_flat.shape
    Dw = outputs["w"].shape[1]
    Dz = outputs["z"].shape[1]
    C = outputs["qy_logits"].shape[1]

    if batch_tile is None:
        batch_tile = _choose_batch_tile(B)
    assert B % batch_tile == 0
    grid = (B // batch_tile,)

    def row_spec(d):
        return pl.BlockSpec((batch_tile, d), lambda i: (i, 0))

    in_specs = [
        row_spec(Dx), row_spec(Dx), row_spec(Dx),          # x, px_mu, px_sigma
        row_spec(Dw), row_spec(Dw), row_spec(Dw),          # w, pw_mu, pw_sigma
        row_spec(Dw), row_spec(Dw),                        # qw_mu, qw_sigma
        row_spec(Dz), row_spec(Dz), row_spec(Dz),          # z, pz_mu, pz_sigma
        row_spec(Dz), row_spec(Dz),                        # qz_mu, qz_sigma
        row_spec(1),                                       # y (int32, [B,1])
        row_spec(C),                                       # qy_logits
    ]
    # Single packed, lane-dense diagnostics output: (5, B), batch on lanes.
    out_specs = pl.BlockSpec((5, batch_tile), lambda i: (0, i))
    out_shape = jax.ShapeDtypeStruct((5, B), jnp.float32)

    # Raise scoped VMEM to cover ~double-buffered tiles, with headroom,
    # capped well below v7x's 64 MiB physical VMEM.
    per_row_floats = 3 * Dx + 5 * Dw + 5 * Dz + 1 + C + 5
    tile_bytes = 4 * per_row_floats * batch_tile
    vmem_limit = int(min(max(32 * 1024 * 1024, 3 * tile_bytes),
                         56 * 1024 * 1024))

    kernel = functools.partial(vi_classifier_kernel, bx, bw, bz, by, Dx)
    diag_packed = pl.pallas_call(
        kernel,
        grid=grid,
        in_specs=in_specs,
        out_specs=out_specs,
        out_shape=out_shape,
        compiler_params=pltpu.CompilerParams(
            dimension_semantics=("parallel",),   # no cross-step dependency
            vmem_limit_bytes=vmem_limit),
    )(
        x_flat, outputs["px_mu"], outputs["px_sigma"],
        outputs["w"], outputs["pw_mu"], outputs["pw_sigma"],
        outputs["qw_mu"], outputs["qw_sigma"],
        outputs["z"], outputs["pz_mu"], outputs["pz_sigma"],
        outputs["qz_mu"], outputs["qz_sigma"],
        y.reshape(B, 1).astype(jnp.int32), outputs["qy_logits"],
    )

    m = diag_packed[0]
    diagnostics = {
        "m": m,
        "log_px": diag_packed[1],
        "kl_w": diag_packed[2],
        "kl_z": diag_packed[3],
        "log_qy": diag_packed[4],
    }
    # Final tiny (B-element) mean in the wrapper keeps the kernel grid
    # parallel (no resident accumulator) per perf review.
    loss = jnp.mean(m)
    return loss, diagnostics


def _reference(outputs, x_flat, y, *, bx, bw, bz, by):
    """Pure-JAX reference mirroring the PyTorch forward."""
    def nlp(v, mu, sig):
        return jnp.sum(-0.5 * ((v - mu) / sig) ** 2 - jnp.log(sig) - HALF_LOG_2PI,
                       axis=-1)
    log_px = nlp(x_flat, outputs["px_mu"], outputs["px_sigma"])
    log_pw = nlp(outputs["w"], outputs["pw_mu"], outputs["pw_sigma"])
    log_qw = nlp(outputs["w"], outputs["qw_mu"], outputs["qw_sigma"])
    log_pz = nlp(outputs["z"], outputs["pz_mu"], outputs["pz_sigma"])
    log_qz = nlp(outputs["z"], outputs["qz_mu"], outputs["qz_sigma"])
    logits = outputs["qy_logits"]
    log_qy = jnp.take_along_axis(
        jax.nn.log_softmax(logits, axis=-1), y[:, None].astype(jnp.int32), axis=-1
    )[:, 0]
    kl_w = log_qw - log_pw
    kl_z = log_qz - log_pz
    m = -bx * log_px + bw * kl_w + bz * kl_z - by * log_qy
    return m.mean(), m, log_px, kl_w, kl_z, log_qy


if __name__ == "__main__":
    # Small shapes consistent with a VAE-style VI classifier on NCHW images.
    B, C, H, W = 16, 4, 16, 16        # x: [B, C, H, W]
    Dx = C * H * W                    # 1024
    Dw, Dz, NCLS = 32, 32, 10
    bx, bw, bz, by = 1.0, 0.5, 0.5, 2.0

    key = jax.random.PRNGKey(0)
    keys = jax.random.split(key, 16)

    x = jax.random.uniform(keys[0], (B, C, H, W), dtype=jnp.float32)
    y = jax.random.randint(keys[1], (B,), 0, NCLS, dtype=jnp.int32)
    x_flat = x.reshape(B, Dx)         # torch .view(B, -1) order (row-major NCHW)

    # Deterministic synthetic "model outputs" (distribution params + samples).
    # TODO(synk): the wrapped `model(x, y)` network itself is outside this loss
    # head; its outputs are synthesized here.
    outputs = {
        "px_mu":    jax.nn.sigmoid(jax.random.normal(keys[2], (B, Dx))),
        "px_sigma": jnp.exp(0.1 * jax.random.normal(keys[3], (B, Dx))) * 0.5,
        "w":        jax.random.normal(keys[4], (B, Dw)),
        "pw_mu":    jnp.zeros((B, Dw), jnp.float32),
        "pw_sigma": jnp.ones((B, Dw), jnp.float32),
        "qw_mu":    0.3 * jax.random.normal(keys[5], (B, Dw)),
        "qw_sigma": jnp.exp(0.1 * jax.random.normal(keys[6], (B, Dw))),
        "z":        jax.random.normal(keys[7], (B, Dz)),
        "pz_mu":    0.1 * jax.random.normal(keys[8], (B, Dz)),
        "pz_sigma": jnp.exp(0.05 * jax.random.normal(keys[9], (B, Dz))),
        "qz_mu":    0.3 * jax.random.normal(keys[10], (B, Dz)),
        "qz_sigma": jnp.exp(0.1 * jax.random.normal(keys[11], (B, Dz))),
        "qy_logits": jax.random.normal(keys[12], (B, NCLS)),
    }
    outputs = {k: v.astype(jnp.float32) for k, v in outputs.items()}

    loss, diag = vi_classifier_loss(outputs, x_flat, y,
                                    bx=bx, bw=bw, bz=bz, by=by)
    jax.block_until_ready(loss)
    jax.block_until_ready(diag)

    # Correctness check against plain-JAX reference.
    ref_loss, ref_m, ref_log_px, ref_kl_w, ref_kl_z, ref_log_qy = _reference(
        outputs, x_flat, y, bx=bx, bw=bw, bz=bz, by=by)
    np.testing.assert_allclose(np.asarray(loss), np.asarray(ref_loss),
                               rtol=1e-4, atol=1e-4)
    np.testing.assert_allclose(np.asarray(diag["m"]), np.asarray(ref_m),
                               rtol=1e-4, atol=1e-4)
    np.testing.assert_allclose(np.asarray(diag["log_px"]), np.asarray(ref_log_px),
                               rtol=1e-4, atol=1e-4)
    np.testing.assert_allclose(np.asarray(diag["kl_w"]), np.asarray(ref_kl_w),
                               rtol=1e-4, atol=1e-4)
    np.testing.assert_allclose(np.asarray(diag["kl_z"]), np.asarray(ref_kl_z),
                               rtol=1e-4, atol=1e-4)
    np.testing.assert_allclose(np.asarray(diag["log_qy"]), np.asarray(ref_log_qy),
                               rtol=1e-4, atol=1e-4)

    print("KERNEL_OK")
</pallas_src>

<mosaic_0001>
module attributes {stable_mosaic.version = 11 : i64} {
  func.func @vi_classifier_kernel(%arg0: i32, %arg1: memref<16x1024xf32, #tpu.memory_space<vmem>>, %arg2: memref<16x1024xf32, #tpu.memory_space<vmem>>, %arg3: memref<16x1024xf32, #tpu.memory_space<vmem>>, %arg4: memref<16x32xf32, #tpu.memory_space<vmem>>, %arg5: memref<16x32xf32, #tpu.memory_space<vmem>>, %arg6: memref<16x32xf32, #tpu.memory_space<vmem>>, %arg7: memref<16x32xf32, #tpu.memory_space<vmem>>, %arg8: memref<16x32xf32, #tpu.memory_space<vmem>>, %arg9: memref<16x32xf32, #tpu.memory_space<vmem>>, %arg10: memref<16x32xf32, #tpu.memory_space<vmem>>, %arg11: memref<16x32xf32, #tpu.memory_space<vmem>>, %arg12: memref<16x32xf32, #tpu.memory_space<vmem>>, %arg13: memref<16x32xf32, #tpu.memory_space<vmem>>, %arg14: memref<16x1xi32, #tpu.memory_space<vmem>>, %arg15: memref<16x10xf32, #tpu.memory_space<vmem>>, %arg16: memref<5x16xf32, #tpu.memory_space<vmem>>) attributes {dimension_semantics = [#tpu.dimension_semantics<parallel>], iteration_bounds = array<i64: 1>, scalar_prefetch = 0 : i64, scratch_operands = 0 : i64, tpu.core_type = #tpu.core_type<tc>, window_params = [{transform_indices = @transform_0, window_bounds = array<i64: 16, 1024>}, {transform_indices = @transform_1, window_bounds = array<i64: 16, 1024>}, {transform_indices = @transform_2, window_bounds = array<i64: 16, 1024>}, {transform_indices = @transform_3, window_bounds = array<i64: 16, 32>}, {transform_indices = @transform_4, window_bounds = array<i64: 16, 32>}, {transform_indices = @transform_5, window_bounds = array<i64: 16, 32>}, {transform_indices = @transform_6, window_bounds = array<i64: 16, 32>}, {transform_indices = @transform_7, window_bounds = array<i64: 16, 32>}, {transform_indices = @transform_8, window_bounds = array<i64: 16, 32>}, {transform_indices = @transform_9, window_bounds = array<i64: 16, 32>}, {transform_indices = @transform_10, window_bounds = array<i64: 16, 32>}, {transform_indices = @transform_11, window_bounds = array<i64: 16, 32>}, {transform_indices = @transform_12, window_bounds = array<i64: 16, 32>}, {transform_indices = @transform_13, window_bounds = array<i64: 16, 1>}, {transform_indices = @transform_14, window_bounds = array<i64: 16, 10>}, {transform_indices = @transform_15, window_bounds = array<i64: 5, 16>}]} {
    %c0 = arith.constant 0 : index
    %c0_0 = arith.constant 0 : index
    %0 = vector.load %arg1[%c0, %c0_0] : memref<16x1024xf32, #tpu.memory_space<vmem>>, vector<16x1024xf32>
    %c0_1 = arith.constant 0 : index
    %c0_2 = arith.constant 0 : index
    %1 = vector.load %arg2[%c0_1, %c0_2] : memref<16x1024xf32, #tpu.memory_space<vmem>>, vector<16x1024xf32>
    %c0_3 = arith.constant 0 : index
    %c0_4 = arith.constant 0 : index
    %2 = vector.load %arg3[%c0_3, %c0_4] : memref<16x1024xf32, #tpu.memory_space<vmem>>, vector<16x1024xf32>
    %3 = arith.subf %0, %1 : vector<16x1024xf32>
    %4 = arith.divf %3, %2 : vector<16x1024xf32>
    %5 = arith.mulf %4, %4 : vector<16x1024xf32>
    %cst = arith.constant dense<0.000000e+00> : vector<16xf32>
    %6 = vector.multi_reduction <add>, %5, %cst [1] : vector<16x1024xf32> to vector<16xf32>
    %7 = vector.shape_cast %6 : vector<16xf32> to vector<16x1xf32>
    %8 = math.log %2 : vector<16x1024xf32>
    %cst_5 = arith.constant dense<0.000000e+00> : vector<16xf32>
    %9 = vector.multi_reduction <add>, %8, %cst_5 [1] : vector<16x1024xf32> to vector<16xf32>
    %10 = vector.shape_cast %9 : vector<16xf32> to vector<16x1xf32>
    %cst_6 = arith.constant -5.000000e-01 : f32
    %11 = vector.broadcast %cst_6 : f32 to vector<16x1xf32>
    %12 = arith.mulf %11, %7 : vector<16x1xf32>
    %13 = arith.subf %12, %10 : vector<16x1xf32>
    %cst_7 = arith.constant 940.993041 : f32
    %14 = vector.broadcast %cst_7 : f32 to vector<16x1xf32>
    %15 = arith.subf %13, %14 : vector<16x1xf32>
    %c0_8 = arith.constant 0 : index
    %c0_9 = arith.constant 0 : index
    %16 = vector.load %arg4[%c0_8, %c0_9] : memref<16x32xf32, #tpu.memory_space<vmem>>, vector<16x32xf32>
    %c0_10 = arith.constant 0 : index
    %c0_11 = arith.constant 0 : index
    %17 = vector.load %arg7[%c0_10, %c0_11] : memref<16x32xf32, #tpu.memory_space<vmem>>, vector<16x32xf32>
    %c0_12 = arith.constant 0 : index
    %c0_13 = arith.constant 0 : index
    %18 = vector.load %arg8[%c0_12, %c0_13] : memref<16x32xf32, #tpu.memory_space<vmem>>, vector<16x32xf32>
    %19 = arith.subf %16, %17 : vector<16x32xf32>
    %20 = arith.divf %19, %18 : vector<16x32xf32>
    %21 = arith.mulf %20, %20 : vector<16x32xf32>
    %cst_14 = arith.constant dense<0.000000e+00> : vector<16xf32>
    %22 = vector.multi_reduction <add>, %21, %cst_14 [1] : vector<16x32xf32> to vector<16xf32>
    %23 = vector.shape_cast %22 : vector<16xf32> to vector<16x1xf32>
    %24 = math.log %18 : vector<16x32xf32>
    %cst_15 = arith.constant dense<0.000000e+00> : vector<16xf32>
    %25 = vector.multi_reduction <add>, %24, %cst_15 [1] : vector<16x32xf32> to vector<16xf32>
    %26 = vector.shape_cast %25 : vector<16xf32> to vector<16x1xf32>
    %cst_16 = arith.constant -5.000000e-01 : f32
    %27 = vector.broadcast %cst_16 : f32 to vector<16x1xf32>
    %28 = arith.mulf %27, %23 : vector<16x1xf32>
    %29 = arith.subf %28, %26 : vector<16x1xf32>
    %c0_17 = arith.constant 0 : index
    %c0_18 = arith.constant 0 : index
    %30 = vector.load %arg5[%c0_17, %c0_18] : memref<16x32xf32, #tpu.memory_space<vmem>>, vector<16x32xf32>
    %c0_19 = arith.constant 0 : index
    %c0_20 = arith.constant 0 : index
    %31 = vector.load %arg6[%c0_19, %c0_20] : memref<16x32xf32, #tpu.memory_space<vmem>>, vector<16x32xf32>
    %32 = arith.subf %16, %30 : vector<16x32xf32>
    %33 = arith.divf %32, %31 : vector<16x32xf32>
    %34 = arith.mulf %33, %33 : vector<16x32xf32>
    %cst_21 = arith.constant dense<0.000000e+00> : vector<16xf32>
    %35 = vector.multi_reduction <add>, %34, %cst_21 [1] : vector<16x32xf32> to vector<16xf32>
    %36 = vector.shape_cast %35 : vector<16xf32> to vector<16x1xf32>
    %37 = math.log %31 : vector<16x32xf32>
    %cst_22 = arith.constant dense<0.000000e+00> : vector<16xf32>
    %38 = vector.multi_reduction <add>, %37, %cst_22 [1] : vector<16x32xf32> to vector<16xf32>
    %39 = vector.shape_cast %38 : vector<16xf32> to vector<16x1xf32>
    %cst_23 = arith.constant -5.000000e-01 : f32
    %40 = vector.broadcast %cst_23 : f32 to vector<16x1xf32>
    %41 = arith.mulf %40, %36 : vector<16x1xf32>
    %42 = arith.subf %41, %39 : vector<16x1xf32>
    %43 = arith.subf %29, %42 : vector<16x1xf32>
    %c0_24 = arith.constant 0 : index
    %c0_25 = arith.constant 0 : index
    %44 = vector.load %arg9[%c0_24, %c0_25] : memref<16x32xf32, #tpu.memory_space<vmem>>, vector<16x32xf32>
    %c0_26 = arith.constant 0 : index
    %c0_27 = arith.constant 0 : index
    %45 = vector.load %arg12[%c0_26, %c0_27] : memref<16x32xf32, #tpu.memory_space<vmem>>, vector<16x32xf32>
    %c0_28 = arith.constant 0 : index
    %c0_29 = arith.constant 0 : index
    %46 = vector.load %arg13[%c0_28, %c0_29] : memref<16x32xf32, #tpu.memory_space<vmem>>, vector<16x32xf32>
    %47 = arith.subf %44, %45 : vector<16x32xf32>
    %48 = arith.divf %47, %46 : vector<16x32xf32>
    %49 = arith.mulf %48, %48 : vector<16x32xf32>
    %cst_30 = arith.constant dense<0.000000e+00> : vector<16xf32>
    %50 = vector.multi_reduction <add>, %49, %cst_30 [1] : vector<16x32xf32> to vector<16xf32>
    %51 = vector.shape_cast %50 : vector<16xf32> to vector<16x1xf32>
    %52 = math.log %46 : vector<16x32xf32>
    %cst_31 = arith.constant dense<0.000000e+00> : vector<16xf32>
    %53 = vector.multi_reduction <add>, %52, %cst_31 [1] : vector<16x32xf32> to vector<16xf32>
    %54 = vector.shape_cast %53 : vector<16xf32> to vector<16x1xf32>
    %cst_32 = arith.constant -5.000000e-01 : f32
    %55 = vector.broadcast %cst_32 : f32 to vector<16x1xf32>
    %56 = arith.mulf %55, %51 : vector<16x1xf32>
    %57 = arith.subf %56, %54 : vector<16x1xf32>
    %c0_33 = arith.constant 0 : index
    %c0_34 = arith.constant 0 : index
    %58 = vector.load %arg10[%c0_33, %c0_34] : memref<16x32xf32, #tpu.memory_space<vmem>>, vector<16x32xf32>
    %c0_35 = arith.constant 0 : index
    %c0_36 = arith.constant 0 : index
    %59 = vector.load %arg11[%c0_35, %c0_36] : memref<16x32xf32, #tpu.memory_space<vmem>>, vector<16x32xf32>
    %60 = arith.subf %44, %58 : vector<16x32xf32>
    %61 = arith.divf %60, %59 : vector<16x32xf32>
    %62 = arith.mulf %61, %61 : vector<16x32xf32>
    %cst_37 = arith.constant dense<0.000000e+00> : vector<16xf32>
    %63 = vector.multi_reduction <add>, %62, %cst_37 [1] : vector<16x32xf32> to vector<16xf32>
    %64 = vector.shape_cast %63 : vector<16xf32> to vector<16x1xf32>
    %65 = math.log %59 : vector<16x32xf32>
    %cst_38 = arith.constant dense<0.000000e+00> : vector<16xf32>
    %66 = vector.multi_reduction <add>, %65, %cst_38 [1] : vector<16x32xf32> to vector<16xf32>
    %67 = vector.shape_cast %66 : vector<16xf32> to vector<16x1xf32>
    %cst_39 = arith.constant -5.000000e-01 : f32
    %68 = vector.broadcast %cst_39 : f32 to vector<16x1xf32>
    %69 = arith.mulf %68, %64 : vector<16x1xf32>
    %70 = arith.subf %69, %67 : vector<16x1xf32>
    %71 = arith.subf %57, %70 : vector<16x1xf32>
    %c0_40 = arith.constant 0 : index
    %c0_41 = arith.constant 0 : index
    %72 = vector.load %arg15[%c0_40, %c0_41] : memref<16x10xf32, #tpu.memory_space<vmem>>, vector<16x10xf32>
    %cst_42 = arith.constant dense<0xFF800000> : vector<16xf32>
    %73 = vector.multi_reduction <maximumf>, %72, %cst_42 [1] : vector<16x10xf32> to vector<16xf32>
    %74 = vector.shape_cast %73 : vector<16xf32> to vector<16x1xf32>
    %75 = vector.broadcast %74 : vector<16x1xf32> to vector<16x10xf32>
    %76 = arith.subf %72, %75 : vector<16x10xf32>
    %77 = math.exp %76 : vector<16x10xf32>
    %cst_43 = arith.constant dense<0.000000e+00> : vector<16xf32>
    %78 = vector.multi_reduction <add>, %77, %cst_43 [1] : vector<16x10xf32> to vector<16xf32>
    %79 = vector.shape_cast %78 : vector<16xf32> to vector<16x1xf32>
    %80 = math.log %79 : vector<16x1xf32>
    %81 = arith.addf %74, %80 : vector<16x1xf32>
    %82 = tpu.iota {dimensions = array<i32: 1>} : vector<16x10xi32>
    %c0_44 = arith.constant 0 : index
    %c0_45 = arith.constant 0 : index
    %83 = vector.load %arg14[%c0_44, %c0_45] : memref<16x1xi32, #tpu.memory_space<vmem>>, vector<16x1xi32>
    %84 = vector.broadcast %83 : vector<16x1xi32> to vector<16x10xi32>
    %85 = arith.cmpi eq, %82, %84 : vector<16x10xi32>
    %86 = arith.extui %85 : vector<16x10xi1> to vector<16x10xi32>
    %87 = arith.sitofp %86 : vector<16x10xi32> to vector<16x10xf32>
    %88 = arith.mulf %87, %72 : vector<16x10xf32>
    %cst_46 = arith.constant dense<0.000000e+00> : vector<16xf32>
    %89 = vector.multi_reduction <add>, %88, %cst_46 [1] : vector<16x10xf32> to vector<16xf32>
    %90 = vector.shape_cast %89 : vector<16xf32> to vector<16x1xf32>
    %91 = arith.subf %90, %81 : vector<16x1xf32>
    %cst_47 = arith.constant -1.000000e+00 : f32
    %92 = vector.broadcast %cst_47 : f32 to vector<16x1xf32>
    %93 = arith.mulf %92, %15 : vector<16x1xf32>
    %cst_48 = arith.constant 5.000000e-01 : f32
    %94 = vector.broadcast %cst_48 : f32 to vector<16x1xf32>
    %95 = arith.mulf %94, %43 : vector<16x1xf32>
    %96 = arith.addf %93, %95 : vector<16x1xf32>
    %cst_49 = arith.constant 5.000000e-01 : f32
    %97 = vector.broadcast %cst_49 : f32 to vector<16x1xf32>
    %98 = arith.mulf %97, %71 : vector<16x1xf32>
    %99 = arith.addf %96, %98 : vector<16x1xf32>
    %cst_50 = arith.constant 2.000000e+00 : f32
    %100 = vector.broadcast %cst_50 : f32 to vector<16x1xf32>
    %101 = arith.mulf %100, %91 : vector<16x1xf32>
    %102 = arith.subf %99, %101 : vector<16x1xf32>
    %103 = tpu.concatenate %102, %15, %43, %71, %91 in 1 : vector<16x1xf32>, vector<16x1xf32>, vector<16x1xf32>, vector<16x1xf32>, vector<16x1xf32> -> vector<16x5xf32>
    %104 = tpu.transpose %103, [1, 0] : vector<16x5xf32> -> vector<5x16xf32>
    %c0_51 = arith.constant 0 : index
    %c0_52 = arith.constant 0 : index
    %105 = vector.load %arg16[%c0_51, %c0_52] : memref<5x16xf32, #tpu.memory_space<vmem>>, vector<5x16xf32>
    tpu.vector_store %arg16[%c0_51, %c0_52], %104 {strides = array<i32>} : memref<5x16xf32, #tpu.memory_space<vmem>>, vector<5x16xf32>,
    return
  }
  func.func @transform_0(%arg0: i32) -> (i32, i32) {
    %c0_i32 = arith.constant 0 : i32
    %c0_i32_0 = arith.constant 0 : i32
    return %arg0, %c0_i32 : i32, i32
  }
  func.func @transform_1(%arg0: i32) -> (i32, i32) {
    %c0_i32 = arith.constant 0 : i32
    %c0_i32_0 = arith.constant 0 : i32
    return %arg0, %c0_i32 : i32, i32
  }
  func.func @transform_2(%arg0: i32) -> (i32, i32) {
    %c0_i32 = arith.constant 0 : i32
    %c0_i32_0 = arith.constant 0 : i32
    return %arg0, %c0_i32 : i32, i32
  }
  func.func @transform_3(%arg0: i32) -> (i32, i32) {
    %c0_i32 = arith.constant 0 : i32
    %c0_i32_0 = arith.constant 0 : i32
    return %arg0, %c0_i32 : i32, i32
  }
  func.func @transform_4(%arg0: i32) -> (i32, i32) {
    %c0_i32 = arith.constant 0 : i32
    %c0_i32_0 = arith.constant 0 : i32
    return %arg0, %c0_i32 : i32, i32
  }
  func.func @transform_5(%arg0: i32) -> (i32, i32) {
    %c0_i32 = arith.constant 0 : i32
    %c0_i32_0 = arith.constant 0 : i32
    return %arg0, %c0_i32 : i32, i32
  }
  func.func @transform_6(%arg0: i32) -> (i32, i32) {
    %c0_i32 = arith.constant 0 : i32
    %c0_i32_0 = arith.constant 0 : i32
    return %arg0, %c0_i32 : i32, i32
  }
  func.func @transform_7(%arg0: i32) -> (i32, i32) {
    %c0_i32 = arith.constant 0 : i32
    %c0_i32_0 = arith.constant 0 : i32
    return %arg0, %c0_i32 : i32, i32
  }
  func.func @transform_8(%arg0: i32) -> (i32, i32) {
    %c0_i32 = arith.constant 0 : i32
    %c0_i32_0 = arith.constant 0 : i32
    return %arg0, %c0_i32 : i32, i32
  }
  func.func @transform_9(%arg0: i32) -> (i32, i32) {
    %c0_i32 = arith.constant 0 : i32
    %c0_i32_0 = arith.constant 0 : i32
    return %arg0, %c0_i32 : i32, i32
  }
  func.func @transform_10(%arg0: i32) -> (i32, i32) {
    %c0_i32 = arith.constant 0 : i32
    %c0_i32_0 = arith.constant 0 : i32
    return %arg0, %c0_i32 : i32, i32
  }
  func.func @transform_11(%arg0: i32) -> (i32, i32) {
    %c0_i32 = arith.constant 0 : i32
    %c0_i32_0 = arith.constant 0 : i32
    return %arg0, %c0_i32 : i32, i32
  }
  func.func @transform_12(%arg0: i32) -> (i32, i32) {
    %c0_i32 = arith.constant 0 : i32
    %c0_i32_0 = arith.constant 0 : i32
    return %arg0, %c0_i32 : i32, i32
  }
  func.func @transform_13(%arg0: i32) -> (i32, i32) {
    %c0_i32 = arith.constant 0 : i32
    %c0_i32_0 = arith.constant 0 : i32
    return %arg0, %c0_i32 : i32, i32
  }
  func.func @transform_14(%arg0: i32) -> (i32, i32) {
    %c0_i32 = arith.constant 0 : i32
    %c0_i32_0 = arith.constant 0 : i32
    return %arg0, %c0_i32 : i32, i32
  }
  func.func @transform_15(%arg0: i32) -> (i32, i32) {
    %c0_i32 = arith.constant 0 : i32
    %c0_i32_0 = arith.constant 0 : i32
    return %c0_i32, %arg0 : i32, i32
  }
}

</mosaic_0001>

<llo_original>
// kernel: tpu_custom_call.1
$region0: #{tpu_custom_call.1}
  #allocation0 [shape = 'u32[]', space=smem, size = 0x4, offset = 0x4, fixed_abs, tag = 'smem constant byte address 0x4 - core index']
  #allocation1 [shape = 'u32[144,128]{1,0:T(1,128)}', space=vmem, size = 0x12000, scoped, tag = 'internal scratch']
  %s0 = inlined_call_operand.hbm [shape: f32[16,1024], index: 0, kind: input, shape index: {}]
  %s1 = inlined_call_operand.hbm [shape: f32[16,1024], index: 1, kind: input, shape index: {}]
  %s2 = inlined_call_operand.hbm [shape: f32[16,1024], index: 2, kind: input, shape index: {}]
  %s3 = inlined_call_operand.vmem [shape: f32[16,32], index: 3, kind: input, shape index: {}]
  %s4 = inlined_call_operand.hbm [shape: f32[16,32], index: 4, kind: input, shape index: {}]
  %s5 = inlined_call_operand.hbm [shape: f32[16,32], index: 5, kind: input, shape index: {}]
  %s6 = inlined_call_operand.hbm [shape: f32[16,32], index: 6, kind: input, shape index: {}]
  %s7 = inlined_call_operand.hbm [shape: f32[16,32], index: 7, kind: input, shape index: {}]
  %s8 = inlined_call_operand.hbm [shape: f32[16,32], index: 8, kind: input, shape index: {}]
  %s9 = inlined_call_operand.vmem [shape: f32[16,32], index: 9, kind: input, shape index: {}]
  %s10 = inlined_call_operand.hbm [shape: f32[16,32], index: 10, kind: input, shape index: {}]
  %s11 = inlined_call_operand.hbm [shape: f32[16,32], index: 11, kind: input, shape index: {}]
  %s12 = inlined_call_operand.hbm [shape: f32[16,32], index: 12, kind: input, shape index: {}]
  %s13 = inlined_call_operand.vmem [shape: s32[16,1], index: 13, kind: input, shape index: {}]
  %s14 = inlined_call_operand.hbm [shape: f32[16,10], index: 14, kind: input, shape index: {}]
  %s15 = inlined_call_operand.hbm [shape: f32[5,16], index: 15, kind: output, shape index: {}]
  %s16 = sld [smem:[#allocation0]]
  $region118: #{tpu_custom_call.1} parent=0
    _
  %s18 = ssub.s32 1, %s16
  %s19 = scalar_select 0, %s18, %s16
  $region1: #{tpu_custom_call.1} parent=0
    #allocation2 [shape = 'u8[65536]{0}', space=vmem, size = 0x10000, scoped, tag = 'input window, operand 0, single buffered']
    #allocation3 [shape = 's32[1]{0}', space=sflag, size = 0x4, scoped, tag = 'scoped memory for tpu_custom_call.1']
    #allocation4 [shape = 's32[1]{0}', space=sflag, size = 0x4, scoped, tag = 'scoped memory for tpu_custom_call.1']
    #allocation5 [shape = 'u8[65536]{0}', space=vmem, size = 0x10000, scoped, tag = 'input window, operand 1, single buffered']
    #allocation6 [shape = 's32[1]{0}', space=sflag, size = 0x4, scoped, tag = 'scoped memory for tpu_custom_call.1']
    #allocation7 [shape = 'u8[65536]{0}', space=vmem, size = 0x10000, scoped, tag = 'input window, operand 2, single buffered']
    #allocation8 [shape = 'u8[8192]{0}', space=vmem, size = 0x2000, scoped, tag = 'input window, operand 4, single buffered']
    #allocation9 [shape = 's32[1]{0}', space=sflag, size = 0x4, scoped, tag = 'scoped memory for tpu_custom_call.1']
    #allocation10 [shape = 'u8[8192]{0}', space=vmem, size = 0x2000, scoped, tag = 'input window, operand 5, single buffered']
    #allocation11 [shape = 'u8[8192]{0}', space=vmem, size = 0x2000, scoped, tag = 'input window, operand 6, single buffered']
    #allocation12 [shape = 's32[1]{0}', space=sflag, size = 0x4, scoped, tag = 'scoped memory for tpu_custom_call.1']
    #allocation13 [shape = 'u8[8192]{0}', space=vmem, size = 0x2000, scoped, tag = 'input window, operand 7, single buffered']
    #allocation14 [shape = 'u8[8192]{0}', space=vmem, size = 0x2000, scoped, tag = 'input window, operand 8, single buffered']
    #allocation15 [shape = 's32[1]{0}', space=sflag, size = 0x4, scoped, tag = 'scoped memory for tpu_custom_call.1']
    #allocation16 [shape = 'u8[8192]{0}', space=vmem, size = 0x2000, scoped, tag = 'input window, operand 10, single buffered']
    #allocation17 [shape = 'u8[8192]{0}', space=vmem, size = 0x2000, scoped, tag = 'input window, operand 11, single buffered']
    #allocation18 [shape = 's32[1]{0}', space=sflag, size = 0x4, scoped, tag = 'scoped memory for tpu_custom_call.1']
    #allocation19 [shape = 'u8[8192]{0}', space=vmem, size = 0x2000, scoped, tag = 'input window, operand 12, single buffered']
    #allocation20 [shape = 'u8[8192]{0}', space=vmem, size = 0x2000, scoped, tag = 'input window, operand 14, single buffered']
    #allocation21 [shape = 's32[1]{0}', space=sflag, size = 0x4, scoped, tag = 'scoped memory for tpu_custom_call.1']
    #allocation22 [shape = 'u8[4096]{0}', space=vmem, size = 0x1000, scoped, tag = 'output window, operand 0, single buffered']
    %20 = vsyncpa [#allocation3], 0
    %21 = vsyncpa [#allocation6], 0
    %22 = vsyncpa [#allocation9], 0
    %23 = vsyncpa [#allocation12], 0
    %24 = vsyncpa [#allocation15], 0
    %25 = vsyncpa [#allocation18], 0
    %26 = vsyncpa [#allocation21], 0
    %27 = vsyncpa [#allocation4], 0
    // Predicated region
    $region2: #{tpu_custom_call.1} parent=1 // pred_check
      _
    $region3: #{tpu_custom_call.1} parent=1 // pred_check_branch
      %29 = sbr.rel (0) target = $region5
    $region4: #{tpu_custom_call.1} parent=1 // pred_region
      %s31 = ssub.s32 2048, 2048
      %32 = vsyncadd [#allocation3], %s31
      %s33 = sshll.u32 [#allocation2], 4
      %s34 = int_to_ptr.vmem [resolvable:$true] %s33
      %39 = dma.hbm_to_vmem [thread:$0]  %s0, 2048, %s34, [#allocation3], 1024, 1024, 64
    $region5: #{tpu_custom_call.1} parent=1 // pred_fallthru
      _
    // Predicated region
    $region6: #{tpu_custom_call.1} parent=1 // pred_check
      _
    $region7: #{tpu_custom_call.1} parent=1 // pred_check_branch
      %41 = sbr.rel (0) target = $region9
    $region8: #{tpu_custom_call.1} parent=1 // pred_region
      %s43 = ssub.s32 2048, 2048
      %44 = vsyncadd [#allocation6], %s43
      %s45 = sshll.u32 [#allocation5], 4
      %s46 = int_to_ptr.vmem [resolvable:$true] %s45
      %51 = dma.hbm_to_vmem [thread:$0]  %s1, 2048, %s46, [#allocation6], 1024, 1024, 64
    $region9: #{tpu_custom_call.1} parent=1 // pred_fallthru
      _
    // Predicated region
    $region10: #{tpu_custom_call.1} parent=1 // pred_check
      _
    $region11: #{tpu_custom_call.1} parent=1 // pred_check_branch
      %53 = sbr.rel (0) target = $region13
    $region12: #{tpu_custom_call.1} parent=1 // pred_region
      %s55 = ssub.s32 2048, 2048
      %56 = vsyncadd [#allocation6], %s55
      %s57 = sshll.u32 [#allocation7], 4
      %s58 = int_to_ptr.vmem [resolvable:$true] %s57
      %63 = dma.hbm_to_vmem [thread:$0]  %s2, 2048, %s58, [#allocation6], 1024, 1024, 64
    $region13: #{tpu_custom_call.1} parent=1 // pred_fallthru
      _
    // Predicated region
    $region14: #{tpu_custom_call.1} parent=1 // pred_check
      _
    $region15: #{tpu_custom_call.1} parent=1 // pred_check_branch
      %65 = sbr.rel (0) target = $region17
    $region16: #{tpu_custom_call.1} parent=1 // pred_region
      _
    $region17: #{tpu_custom_call.1} parent=1 // pred_fallthru
      _
    // Predicated region
    $region18: #{tpu_custom_call.1} parent=1 // pred_check
      _
    $region19: #{tpu_custom_call.1} parent=1 // pred_check_branch
      %67 = sbr.rel (0) target = $region21
    $region20: #{tpu_custom_call.1} parent=1 // pred_region
      %s69 = ssub.s32 256, 256
      %70 = vsyncadd [#allocation9], %s69
      %s71 = sshll.u32 [#allocation8], 4
      %s72 = int_to_ptr.vmem [resolvable:$true] %s71
      %77 = dma.hbm_to_vmem [thread:$0]  %s4, 256, %s72, [#allocation9], 128, 128, 8
    $region21: #{tpu_custom_call.1} parent=1 // pred_fallthru
      _
    // Predicated region
    $region22: #{tpu_custom_call.1} parent=1 // pred_check
      _
    $region23: #{tpu_custom_call.1} parent=1 // pred_check_branch
      %79 = sbr.rel (0) target = $region25
    $region24: #{tpu_custom_call.1} parent=1 // pred_region
      %s81 = ssub.s32 256, 256
      %82 = vsyncadd [#allocation9], %s81
      %s83 = sshll.u32 [#allocation10], 4
      %s84 = int_to_ptr.vmem [resolvable:$true] %s83
      %89 = dma.hbm_to_vmem [thread:$0]  %s5, 256, %s84, [#allocation9], 128, 128, 8
    $region25: #{tpu_custom_call.1} parent=1 // pred_fallthru
      _
    // Predicated region
    $region26: #{tpu_custom_call.1} parent=1 // pred_check
      _
    $region27: #{tpu_custom_call.1} parent=1 // pred_check_branch
      %91 = sbr.rel (0) target = $region29
    $region28: #{tpu_custom_call.1} parent=1 // pred_region
      %s93 = ssub.s32 256, 256
      %94 = vsyncadd [#allocation12], %s93
      %s95 = sshll.u32 [#allocation11], 4
      %s96 = int_to_ptr.vmem [resolvable:$true] %s95
      %101 = dma.hbm_to_vmem [thread:$0]  %s6, 256, %s96, [#allocation12], 128, 128, 8
    $region29: #{tpu_custom_call.1} parent=1 // pred_fallthru
      _
    // Predicated region
    $region30: #{tpu_custom_call.1} parent=1 // pred_check
      _
    $region31: #{tpu_custom_call.1} parent=1 // pred_check_branch
      %103 = sbr.rel (0) target = $region33
    $region32: #{tpu_custom_call.1} parent=1 // pred_region
      %s105 = ssub.s32 256, 256
      %106 = vsyncadd [#allocation12], %s105
      %s107 = sshll.u32 [#allocation13], 4
      %s108 = int_to_ptr.vmem [resolvable:$true] %s107
      %113 = dma.hbm_to_vmem [thread:$0]  %s7, 256, %s108, [#allocation12], 128, 128, 8
    $region33: #{tpu_custom_call.1} parent=1 // pred_fallthru
      _
    // Predicated region
    $region34: #{tpu_custom_call.1} parent=1 // pred_check
      _
    $region35: #{tpu_custom_call.1} parent=1 // pred_check_branch
      %115 = sbr.rel (0) target = $region37
    $region36: #{tpu_custom_call.1} parent=1 // pred_region
      %s117 = ssub.s32 256, 256
      %118 = vsyncadd [#allocation15], %s117
      %s119 = sshll.u32 [#allocation14], 4
      %s120 = int_to_ptr.vmem [resolvable:$true] %s119
      %125 = dma.hbm_to_vmem [thread:$0]  %s8, 256, %s120, [#allocation15], 128, 128, 8
    $region37: #{tpu_custom_call.1} parent=1 // pred_fallthru
      _
    // Predicated region
    $region38: #{tpu_custom_call.1} parent=1 // pred_check
      _
    $region39: #{tpu_custom_call.1} parent=1 // pred_check_branch
      %127 = sbr.rel (0) target = $region41
    $region40: #{tpu_custom_call.1} parent=1 // pred_region
      _
    $region41: #{tpu_custom_call.1} parent=1 // pred_fallthru
      _
    // Predicated region
    $region42: #{tpu_custom_call.1} parent=1 // pred_check
      _
    $region43: #{tpu_custom_call.1} parent=1 // pred_check_branch
      %129 = sbr.rel (0) target = $region45
    $region44: #{tpu_custom_call.1} parent=1 // pred_region
      %s131 = ssub.s32 256, 256
      %132 = vsyncadd [#allocation15], %s131
      %s133 = sshll.u32 [#allocation16], 4
      %s134 = int_to_ptr.vmem [resolvable:$true] %s133
      %139 = dma.hbm_to_vmem [thread:$0]  %s10, 256, %s134, [#allocation15], 128, 128, 8
    $region45: #{tpu_custom_call.1} parent=1 // pred_fallthru
      _
    // Predicated region
    $region46: #{tpu_custom_call.1} parent=1 // pred_check
      _
    $region47: #{tpu_custom_call.1} parent=1 // pred_check_branch
      %141 = sbr.rel (0) target = $region49
    $region48: #{tpu_custom_call.1} parent=1 // pred_region
      %s143 = ssub.s32 256, 256
      %144 = vsyncadd [#allocation18], %s143
      %s145 = sshll.u32 [#allocation17], 4
      %s146 = int_to_ptr.vmem [resolvable:$true] %s145
      %151 = dma.hbm_to_vmem [thread:$0]  %s11, 256, %s146, [#allocation18], 128, 128, 8
    $region49: #{tpu_custom_call.1} parent=1 // pred_fallthru
      _
    // Predicated region
    $region50: #{tpu_custom_call.1} parent=1 // pred_check
      _
    $region51: #{tpu_custom_call.1} parent=1 // pred_check_branch
      %153 = sbr.rel (0) target = $region53
    $region52: #{tpu_custom_call.1} parent=1 // pred_region
      %s155 = ssub.s32 256, 256
      %156 = vsyncadd [#allocation18], %s155
      %s157 = sshll.u32 [#allocation19], 4
      %s158 = int_to_ptr.vmem [resolvable:$true] %s157
      %163 = dma.hbm_to_vmem [thread:$0]  %s12, 256, %s158, [#allocation18], 128, 128, 8
    $region53: #{tpu_custom_call.1} parent=1 // pred_fallthru
      _
    // Predicated region
    $region54: #{tpu_custom_call.1} parent=1 // pred_check
      _
    $region55: #{tpu_custom_call.1} parent=1 // pred_check_branch
      %165 = sbr.rel (0) target = $region57
    $region56: #{tpu_custom_call.1} parent=1 // pred_region
      _
    $region57: #{tpu_custom_call.1} parent=1 // pred_fallthru
      _
    // Predicated region
    $region58: #{tpu_custom_call.1} parent=1 // pred_check
      _
    $region59: #{tpu_custom_call.1} parent=1 // pred_check_branch
      %167 = sbr.rel (0) target = $region61
    $region60: #{tpu_custom_call.1} parent=1 // pred_region
      %s169 = ssub.s32 256, 256
      %170 = vsyncadd [#allocation21], %s169
      %s171 = sshll.u32 [#allocation20], 4
      %s172 = int_to_ptr.vmem [resolvable:$true] %s171
      %177 = dma.hbm_to_vmem [thread:$0]  %s14, 256, %s172, [#allocation21], 128, 128, 8
    $region61: #{tpu_custom_call.1} parent=1 // pred_fallthru
      _
    // Predicated region
    $region62: #{tpu_custom_call.1} parent=1 // pred_check
      _
    $region63: #{tpu_custom_call.1} parent=1 // pred_check_branch
      %179 = sbr.rel (0) target = $region65
    $region64: #{tpu_custom_call.1} parent=1 // pred_region
      %180 = dma.done [#allocation3], 2048
    $region65: #{tpu_custom_call.1} parent=1 // pred_fallthru
      _
    // Predicated region
    $region66: #{tpu_custom_call.1} parent=1 // pred_check
      _
    $region67: #{tpu_custom_call.1} parent=1 // pred_check_branch
      %182 = sbr.rel (0) target = $region69
    $region68: #{tpu_custom_call.1} parent=1 // pred_region
      %183 = dma.done [#allocation6], 2048
    $region69: #{tpu_custom_call.1} parent=1 // pred_fallthru
      _
    // Predicated region
    $region70: #{tpu_custom_call.1} parent=1 // pred_check
      _
    $region71: #{tpu_custom_call.1} parent=1 // pred_check_branch
      %185 = sbr.rel (0) target = $region73
    $region72: #{tpu_custom_call.1} parent=1 // pred_region
      %186 = dma.done [#allocation6], 2048
    $region73: #{tpu_custom_call.1} parent=1 // pred_fallthru
      _
    // Predicated region
    $region74: #{tpu_custom_call.1} parent=1 // pred_check
      _
    $region75: #{tpu_custom_call.1} parent=1 // pred_check_branch
      %188 = sbr.rel (0) target = $region77
    $region76: #{tpu_custom_call.1} parent=1 // pred_region
      %189 = dma.done [#allocation9], 256
    $region77: #{tpu_custom_call.1} parent=1 // pred_fallthru
      _
    // Predicated region
    $region78: #{tpu_custom_call.1} parent=1 // pred_check
      _
    $region79: #{tpu_custom_call.1} parent=1 // pred_check_branch
      %191 = sbr.rel (0) target = $region81
    $region80: #{tpu_custom_call.1} parent=1 // pred_region
      %192 = dma.done [#allocation9], 256
    $region81: #{tpu_custom_call.1} parent=1 // pred_fallthru
      _
    // Predicated region
    $region82: #{tpu_custom_call.1} parent=1 // pred_check
      _
    $region83: #{tpu_custom_call.1} parent=1 // pred_check_branch
      %194 = sbr.rel (0) target = $region85
    $region84: #{tpu_custom_call.1} parent=1 // pred_region
      %195 = dma.done [#allocation12], 256
    $region85: #{tpu_custom_call.1} parent=1 // pred_fallthru
      _
    // Predicated region
    $region86: #{tpu_custom_call.1} parent=1 // pred_check
      _
    $region87: #{tpu_custom_call.1} parent=1 // pred_check_branch
      %197 = sbr.rel (0) target = $region89
    $region88: #{tpu_custom_call.1} parent=1 // pred_region
      %198 = dma.done [#allocation12], 256
    $region89: #{tpu_custom_call.1} parent=1 // pred_fallthru
      _
    // Predicated region
    $region90: #{tpu_custom_call.1} parent=1 // pred_check
      _
    $region91: #{tpu_custom_call.1} parent=1 // pred_check_branch
      %200 = sbr.rel (0) target = $region93
    $region92: #{tpu_custom_call.1} parent=1 // pred_region
      %201 = dma.done [#allocation15], 256
    $region93: #{tpu_custom_call.1} parent=1 // pred_fallthru
      _
    // Predicated region
    $region94: #{tpu_custom_call.1} parent=1 // pred_check
      _
    $region95: #{tpu_custom_call.1} parent=1 // pred_check_branch
      %203 = sbr.rel (0) target = $region97
    $region96: #{tpu_custom_call.1} parent=1 // pred_region
      %204 = dma.done [#allocation15], 256
    $region97: #{tpu_custom_call.1} parent=1 // pred_fallthru
      _
    // Predicated region
    $region98: #{tpu_custom_call.1} parent=1 // pred_check
      _
    $region99: #{tpu_custom_call.1} parent=1 // pred_check_branch
      %206 = sbr.rel (0) target = $region101
    $region100: #{tpu_custom_call.1} parent=1 // pred_region
      %207 = dma.done [#allocation18], 256
    $region101: #{tpu_custom_call.1} parent=1 // pred_fallthru
      _
    // Predicated region
    $region102: #{tpu_custom_call.1} parent=1 // pred_check
      _
    $region103: #{tpu_custom_call.1} parent=1 // pred_check_branch
      %209 = sbr.rel (0) target = $region105
    $region104: #{tpu_custom_call.1} parent=1 // pred_region
      %210 = dma.done [#allocation18], 256
    $region105: #{tpu_custom_call.1} parent=1 // pred_fallthru
      _
    // Predicated region
    $region106: #{tpu_custom_call.1} parent=1 // pred_check
      _
    $region107: #{tpu_custom_call.1} parent=1 // pred_check_branch
      %212 = sbr.rel (0) target = $region109
    $region108: #{tpu_custom_call.1} parent=1 // pred_region
      %213 = dma.done [#allocation21], 256
    $region109: #{tpu_custom_call.1} parent=1 // pred_fallthru
      _
    %v214 = vld [vmem:[#allocation2] sm:$0xff]
    %v215 = vld [vmem:[#allocation2 + $0x8] sm:$0xff]
    %v216 = vld [vmem:[#allocation2 + $0x10] sm:$0xff]
    %v217 = vld [vmem:[#allocation2 + $0x18] sm:$0xff]
    %v218 = vld [vmem:[#allocation2 + $0x20] sm:$0xff]
    %v219 = vld [vmem:[#allocation2 + $0x28] sm:$0xff]
    %v220 = vld [vmem:[#allocation2 + $0x30] sm:$0xff]
    %v221 = vld [vmem:[#allocation2 + $0x38] sm:$0xff]
    %v222 = vld [vmem:[#allocation2 + $0x40] sm:$0xff]
    %v223 = vld [vmem:[#allocation2 + $0x48] sm:$0xff]
    %v224 = vld [vmem:[#allocation2 + $0x50] sm:$0xff]
    %v225 = vld [vmem:[#allocation2 + $0x58] sm:$0xff]
    %v226 = vld [vmem:[#allocation2 + $0x60] sm:$0xff]
    %v227 = vld [vmem:[#allocation2 + $0x68] sm:$0xff]
    %v228 = vld [vmem:[#allocation2 + $0x70] sm:$0xff]
    %v229 = vld [vmem:[#allocation2 + $0x78] sm:$0xff]
    %v230 = vld [vmem:[#allocation5] sm:$0xff]
    %v231 = vld [vmem:[#allocation5 + $0x8] sm:$0xff]
    %v232 = vld [vmem:[#allocation5 + $0x10] sm:$0xff]
    %v233 = vld [vmem:[#allocation5 + $0x18] sm:$0xff]
    %v234 = vld [vmem:[#allocation5 + $0x20] sm:$0xff]
    %v235 = vld [vmem:[#allocation5 + $0x28] sm:$0xff]
    %v236 = vld [vmem:[#allocation5 + $0x30] sm:$0xff]
    %v237 = vld [vmem:[#allocation5 + $0x38] sm:$0xff]
    %v238 = vld [vmem:[#allocation5 + $0x40] sm:$0xff]
    %v239 = vld [vmem:[#allocation5 + $0x48] sm:$0xff]
    %v240 = vld [vmem:[#allocation5 + $0x50] sm:$0xff]
    %v241 = vld [vmem:[#allocation5 + $0x58] sm:$0xff]
    %v242 = vld [vmem:[#allocation5 + $0x60] sm:$0xff]
    %v243 = vld [vmem:[#allocation5 + $0x68] sm:$0xff]
    %v244 = vld [vmem:[#allocation5 + $0x70] sm:$0xff]
    %v245 = vld [vmem:[#allocation5 + $0x78] sm:$0xff]
    %v246 = vld [vmem:[#allocation7] sm:$0xff]
    %v247 = vld [vmem:[#allocation7 + $0x8] sm:$0xff]
    %v248 = vld [vmem:[#allocation7 + $0x10] sm:$0xff]
    %v249 = vld [vmem:[#allocation7 + $0x18] sm:$0xff]
    %v250 = vld [vmem:[#allocation7 + $0x20] sm:$0xff]
    %v251 = vld [vmem:[#allocation7 + $0x28] sm:$0xff]
    %v252 = vld [vmem:[#allocation7 + $0x30] sm:$0xff]
    %v253 = vld [vmem:[#allocation7 + $0x38] sm:$0xff]
    %v254 = vld [vmem:[#allocation7 + $0x40] sm:$0xff]
    %v255 = vld [vmem:[#allocation7 + $0x48] sm:$0xff]
    %v256 = vld [vmem:[#allocation7 + $0x50] sm:$0xff]
    %v257 = vld [vmem:[#allocation7 + $0x58] sm:$0xff]
    %v258 = vld [vmem:[#allocation7 + $0x60] sm:$0xff]
    %v259 = vld [vmem:[#allocation7 + $0x68] sm:$0xff]
    %v260 = vld [vmem:[#allocation7 + $0x70] sm:$0xff]
    %v261 = vld [vmem:[#allocation7 + $0x78] sm:$0xff]
    %v262 = vsub.f32 %v214, %v230
    %v263 = vsub.f32 %v215, %v231
    %v264 = vsub.f32 %v216, %v232
    %v265 = vsub.f32 %v217, %v233
    %v266 = vsub.f32 %v218, %v234
    %v267 = vsub.f32 %v219, %v235
    %v268 = vsub.f32 %v220, %v236
    %v269 = vsub.f32 %v221, %v237
    %v270 = vsub.f32 %v222, %v238
    %v271 = vsub.f32 %v223, %v239
    %v272 = vsub.f32 %v224, %v240
    %v273 = vsub.f32 %v225, %v241
    %v274 = vsub.f32 %v226, %v242
    %v275 = vsub.f32 %v227, %v243
    %v276 = vsub.f32 %v228, %v244
    %v277 = vsub.f32 %v229, %v245
    %v278 = vrcp.pop %v246
    %v279 = vmul.f32 %v262, %v278
    %v280 = vrcp.pop %v247
    %v281 = vmul.f32 %v263, %v280
    %v282 = vrcp.pop %v248
    %v283 = vmul.f32 %v264, %v282
    %v284 = vrcp.pop %v249
    %v285 = vmul.f32 %v265, %v284
    %v286 = vrcp.pop %v250
    %v287 = vmul.f32 %v266, %v286
    %v288 = vrcp.pop %v251
    %v289 = vmul.f32 %v267, %v288
    %v290 = vrcp.pop %v252
    %v291 = vmul.f32 %v268, %v290
    %v292 = vrcp.pop %v253
    %v293 = vmul.f32 %v269, %v292
    %v294 = vrcp.pop %v254
    %v295 = vmul.f32 %v270, %v294
    %v296 = vrcp.pop %v255
    %v297 = vmul.f32 %v271, %v296
    %v298 = vrcp.pop %v256
    %v299 = vmul.f32 %v272, %v298
    %v300 = vrcp.pop %v257
    %v301 = vmul.f32 %v273, %v300
    %v302 = vrcp.pop %v258
    %v303 = vmul.f32 %v274, %v302
    %v304 = vrcp.pop %v259
    %v305 = vmul.f32 %v275, %v304
    %v306 = vrcp.pop %v260
    %v307 = vmul.f32 %v276, %v306
    %v308 = vrcp.pop %v261
    %v309 = vmul.f32 %v277, %v308
    %v310 = vmul.f32 %v279, %v279
    %v311 = vmul.f32 %v281, %v281
    %v312 = vmul.f32 %v283, %v283
    %v313 = vmul.f32 %v285, %v285
    %v314 = vmul.f32 %v287, %v287
    %v315 = vmul.f32 %v289, %v289
    %v316 = vmul.f32 %v291, %v291
    %v317 = vmul.f32 %v293, %v293
    %v318 = vmul.f32 %v295, %v295
    %v319 = vmul.f32 %v297, %v297
    %v320 = vmul.f32 %v299, %v299
    %v321 = vmul.f32 %v301, %v301
    %v322 = vmul.f32 %v303, %v303
    %v323 = vmul.f32 %v305, %v305
    %v324 = vmul.f32 %v307, %v307
    %v325 = vmul.f32 %v309, %v309
    %v326 = vadd.f32 %v310, %v311
    %v327 = vadd.f32 %v326, %v312
    %v328 = vadd.f32 %v327, %v313
    %v329 = vadd.f32 %v328, %v314
    %v330 = vadd.f32 %v329, %v315
    %v331 = vadd.f32 %v330, %v316
    %v332 = vadd.f32 %v331, %v317
    %333 = vadd.xlane.f32.xlu0 %v332
    %v334 = vpop.xlane.xlu0 %333
    %v335 = vadd.f32 %v318, %v319
    %v336 = vadd.f32 %v335, %v320
    %v337 = vadd.f32 %v336, %v321
    %v338 = vadd.f32 %v337, %v322
    %v339 = vadd.f32 %v338, %v323
    %v340 = vadd.f32 %v339, %v324
    %v341 = vadd.f32 %v340, %v325
    %342 = vadd.xlane.f32.xlu0 %v341
    %v343 = vpop.xlane.xlu0 %342
    %v344 = vlog2.pop %v246
    %v345 = vmul.f32 %v344, 0.6931472
    %v346 = vlog2.pop %v247
    %v347 = vmul.f32 %v346, 0.6931472
    %v348 = vlog2.pop %v248
    %v349 = vmul.f32 %v348, 0.6931472
    %v350 = vlog2.pop %v249
    %v351 = vmul.f32 %v350, 0.6931472
    %v352 = vlog2.pop %v250
    %v353 = vmul.f32 %v352, 0.6931472
    %v354 = vlog2.pop %v251
    %v355 = vmul.f32 %v354, 0.6931472
    %v356 = vlog2.pop %v252
    %v357 = vmul.f32 %v356, 0.6931472
    %v358 = vlog2.pop %v253
    %v359 = vmul.f32 %v358, 0.6931472
    %v360 = vlog2.pop %v254
    %v361 = vmul.f32 %v360, 0.6931472
    %v362 = vlog2.pop %v255
    %v363 = vmul.f32 %v362, 0.6931472
    %v364 = vlog2.pop %v256
    %v365 = vmul.f32 %v364, 0.6931472
    %v366 = vlog2.pop %v257
    %v367 = vmul.f32 %v366, 0.6931472
    %v368 = vlog2.pop %v258
    %v369 = vmul.f32 %v368, 0.6931472
    %v370 = vlog2.pop %v259
    %v371 = vmul.f32 %v370, 0.6931472
    %v372 = vlog2.pop %v260
    %v373 = vmul.f32 %v372, 0.6931472
    %v374 = vlog2.pop %v261
    %v375 = vmul.f32 %v374, 0.6931472
    %v376 = vadd.f32 %v345, %v347
    %v377 = vadd.f32 %v376, %v349
    %v378 = vadd.f32 %v377, %v351
    %v379 = vadd.f32 %v378, %v353
    %v380 = vadd.f32 %v379, %v355
    %v381 = vadd.f32 %v380, %v357
    %v382 = vadd.f32 %v381, %v359
    %383 = vadd.xlane.f32.xlu0 %v382
    %v384 = vpop.xlane.xlu0 %383
    %v385 = vadd.f32 %v361, %v363
    %v386 = vadd.f32 %v385, %v365
    %v387 = vadd.f32 %v386, %v367
    %v388 = vadd.f32 %v387, %v369
    %v389 = vadd.f32 %v388, %v371
    %v390 = vadd.f32 %v389, %v373
    %v391 = vadd.f32 %v390, %v375
    %392 = vadd.xlane.f32.xlu0 %v391
    %v393 = vpop.xlane.xlu0 %392
    %v394 = vmul.f32 %v334, -0.5
    %v395 = vmul.f32 %v343, -0.5
    %v396 = vsub.f32 %v394, %v384
    %v397 = vsub.f32 %v395, %v393
    %v398 = vsub.f32 %v396, 940.99304
    %v399 = vsub.f32 %v397, 940.99304
    %v400 = vld [vmem:[%s3] sm:$0xff]
    %v401 = vld [vmem:[%s3 + $0x8] sm:$0xff]
    %v402 = vld [vmem:[#allocation11] sm:$0xff]
    %v403 = vld [vmem:[#allocation11 + $0x8] sm:$0xff]
    %v404 = vld [vmem:[#allocation13] sm:$0xff]
    %v405 = vld [vmem:[#allocation13 + $0x8] sm:$0xff]
    %v406 = vsub.f32 %v400, %v402
    %v407 = vsub.f32 %v401, %v403
    %v408 = vrcp.pop %v404
    %v409 = vmul.f32 %v406, %v408
    %v410 = vrcp.pop %v405
    %v411 = vmul.f32 %v407, %v410
    %v412 = vmul.f32 %v409, %v409
    %v413 = vmul.f32 %v411, %v411
    %vm414 = vcmask 261120
    %v415 = vsel %vm414, %v412, 0.0
    %416 = vadd.xlane.f32.xlu0 %v415
    %v417 = vpop.xlane.xlu0 %416
    %v418 = vsel %vm414, %v413, 0.0
    %419 = vadd.xlane.f32.xlu0 %v418
    %v420 = vpop.xlane.xlu0 %419
    %v421 = vlog2.pop %v404
    %v422 = vmul.f32 %v421, 0.6931472
    %v423 = vlog2.pop %v405
    %v424 = vmul.f32 %v423, 0.6931472
    %v425 = vsel %vm414, %v422, 0.0
    %426 = vadd.xlane.f32.xlu0 %v425
    %v427 = vpop.xlane.xlu0 %426
    %v428 = vsel %vm414, %v424, 0.0
    %429 = vadd.xlane.f32.xlu0 %v428
    %v430 = vpop.xlane.xlu0 %429
    %v431 = vmul.f32 %v417, -0.5
    %v432 = vmul.f32 %v420, -0.5
    %v433 = vsub.f32 %v431, %v427
    %v434 = vsub.f32 %v432, %v430
    %v435 = vld [vmem:[#allocation8] sm:$0xff]
    %v436 = vld [vmem:[#allocation8 + $0x8] sm:$0xff]
    %v437 = vld [vmem:[#allocation10] sm:$0xff]
    %v438 = vld [vmem:[#allocation10 + $0x8] sm:$0xff]
    %v439 = vsub.f32 %v400, %v435
    %v440 = vsub.f32 %v401, %v436
    %v441 = vrcp.pop %v437
    %v442 = vmul.f32 %v439, %v441
    %v443 = vrcp.pop %v438
    %v444 = vmul.f32 %v440, %v443
    %v445 = vmul.f32 %v442, %v442
    %v446 = vmul.f32 %v444, %v444
    %v447 = vsel %vm414, %v445, 0.0
    %448 = vadd.xlane.f32.xlu0 %v447
    %v449 = vpop.xlane.xlu0 %448
    %v450 = vsel %vm414, %v446, 0.0
    %451 = vadd.xlane.f32.xlu0 %v450
    %v452 = vpop.xlane.xlu0 %451
    %v453 = vlog2.pop %v437
    %v454 = vmul.f32 %v453, 0.6931472
    %v455 = vlog2.pop %v438
    %v456 = vmul.f32 %v455, 0.6931472
    %v457 = vsel %vm414, %v454, 0.0
    %458 = vadd.xlane.f32.xlu0 %v457
    %v459 = vpop.xlane.xlu0 %458
    %v460 = vsel %vm414, %v456, 0.0
    %461 = vadd.xlane.f32.xlu0 %v460
    %v462 = vpop.xlane.xlu0 %461
    %v463 = vmul.f32 %v449, -0.5
    %v464 = vmul.f32 %v452, -0.5
    %v465 = vsub.f32 %v463, %v459
    %v466 = vsub.f32 %v464, %v462
    %v467 = vsub.f32 %v433, %v465
    %v468 = vsub.f32 %v434, %v466
    %v469 = vld [vmem:[#allocation14] sm:$0xff]
    %v470 = vld [vmem:[#allocation14 + $0x8] sm:$0xff]
    %v471 = vld [vmem:[#allocation17] sm:$0xff]
    %v472 = vld [vmem:[#allocation17 + $0x8] sm:$0xff]
    %v473 = vld [vmem:[#allocation19] sm:$0xff]
    %v474 = vld [vmem:[#allocation19 + $0x8] sm:$0xff]
    %v475 = vsub.f32 %v469, %v471
    %v476 = vsub.f32 %v470, %v472
    %v477 = vrcp.pop %v473
    %v478 = vmul.f32 %v475, %v477
    %v479 = vrcp.pop %v474
    %v480 = vmul.f32 %v476, %v479
    %v481 = vmul.f32 %v478, %v478
    %v482 = vmul.f32 %v480, %v480
    %v483 = vsel %vm414, %v481, 0.0
    %484 = vadd.xlane.f32.xlu0 %v483
    %v485 = vpop.xlane.xlu0 %484
    %v486 = vsel %vm414, %v482, 0.0
    %487 = vadd.xlane.f32.xlu0 %v486
    %v488 = vpop.xlane.xlu0 %487
    %v489 = vlog2.pop %v473
    %v490 = vmul.f32 %v489, 0.6931472
    %v491 = vlog2.pop %v474
    %v492 = vmul.f32 %v491, 0.6931472
    %v493 = vsel %vm414, %v490, 0.0
    %494 = vadd.xlane.f32.xlu0 %v493
    %v495 = vpop.xlane.xlu0 %494
    %v496 = vsel %vm414, %v492, 0.0
    %497 = vadd.xlane.f32.xlu0 %v496
    %v498 = vpop.xlane.xlu0 %497
    %v499 = vmul.f32 %v485, -0.5
    %v500 = vmul.f32 %v488, -0.5
    %v501 = vsub.f32 %v499, %v495
    %v502 = vsub.f32 %v500, %v498
    %v503 = vld [vmem:[%s9] sm:$0xff]
    %v504 = vld [vmem:[%s9 + $0x8] sm:$0xff]
    %v505 = vld [vmem:[#allocation16] sm:$0xff]
    %v506 = vld [vmem:[#allocation16 + $0x8] sm:$0xff]
    %v507 = vsub.f32 %v469, %v503
    %v508 = vsub.f32 %v470, %v504
    %v509 = vrcp.pop %v505
    %v510 = vmul.f32 %v507, %v509
    %v511 = vrcp.pop %v506
    %v512 = vmul.f32 %v508, %v511
    %v513 = vmul.f32 %v510, %v510
    %v514 = vmul.f32 %v512, %v512
    %v515 = vsel %vm414, %v513, 0.0
    %516 = vadd.xlane.f32.xlu0 %v515
    %v517 = vpop.xlane.xlu0 %516
    %v518 = vsel %vm414, %v514, 0.0
    %519 = vadd.xlane.f32.xlu0 %v518
    %v520 = vpop.xlane.xlu0 %519
    %v521 = vlog2.pop %v505
    %v522 = vmul.f32 %v521, 0.6931472
    %v523 = vlog2.pop %v506
    %v524 = vmul.f32 %v523, 0.6931472
    %v525 = vsel %vm414, %v522, 0.0
    %526 = vadd.xlane.f32.xlu0 %v525
    %v527 = vpop.xlane.xlu0 %526
    %v528 = vsel %vm414, %v524, 0.0
    %529 = vadd.xlane.f32.xlu0 %v528
    %v530 = vpop.xlane.xlu0 %529
    %v531 = vmul.f32 %v517, -0.5
    %v532 = vmul.f32 %v520, -0.5
    %v533 = vsub.f32 %v531, %v527
    %v534 = vsub.f32 %v532, %v530
    %v535 = vsub.f32 %v501, %v533
    %v536 = vsub.f32 %v502, %v534
    %v537 = vld [vmem:[#allocation20] sm:$0xff]
    %v538 = vld [vmem:[#allocation20 + $0x8] sm:$0xff]
    %vm539 = vcmask 80896
    %v540 = vsel %vm539, %v537, -inf
    %541 = vmax.xlane.f32.xlu0 %v540
    %v542 = vpop.xlane.xlu0 %541
    %v543 = vsel %vm539, %v538, -inf
    %544 = vmax.xlane.f32.xlu0 %v543
    %v545 = vpop.xlane.xlu0 %544
    %v546 = vsub.f32 %v537, %v542
    %v547 = vsub.f32 %v538, %v545
    %v548 = vmul.f32 %v546, 1.442695
    %v549 = vpow.pop %v548
    %v550 = vmul.f32 %v547, 1.442695
    %v551 = vpow.pop %v550
    %v552 = vsel %vm539, %v549, 0.0
    %553 = vadd.xlane.f32.xlu0 %v552
    %v554 = vpop.xlane.xlu0 %553
    %v555 = vsel %vm539, %v551, 0.0
    %556 = vadd.xlane.f32.xlu0 %v555
    %v557 = vpop.xlane.xlu0 %556
    %v558 = vlog2.pop %v554
    %v559 = vmul.f32 %v558, 0.6931472
    %v560 = vlog2.pop %v557
    %v561 = vmul.f32 %v560, 0.6931472
    %v562 = vadd.f32 %v542, %v559
    %v563 = vadd.f32 %v545, %v561
    %v564 = vlaneseq
    %v565 = vand.u32 %v564, 127
    %v566 = vld [vmem:[%s13] sm:$0xff]
    %v567 = vld [vmem:[%s13 + $0x8] sm:$0xff]
    %568 = vset.pattern.permute.xlu0 0
    %569 = vperm.xlu0 %568, %v566
    %v570 = vpop.permute.xlu0 %569
    %571 = vset.pattern.permute.xlu0 0
    %572 = vperm.xlu0 %571, %v567
    %v573 = vpop.permute.xlu0 %572
    %vm574 = vcmp.eq.s32.totalorder %v565, %v570
    %vm575 = vcmp.eq.s32.totalorder %v565, %v573
    %v576 = vsel %vm574, 1, 0
    %v577 = vsel %vm575, 1, 0
    %v578 = vcvt.s32.f32 %v576
    %v579 = vcvt.s32.f32 %v577
    %v580 = vmul.f32 %v578, %v537
    %v581 = vmul.f32 %v579, %v538
    %v582 = vsel %vm539, %v580, 0.0
    %583 = vadd.xlane.f32.xlu0 %v582
    %v584 = vpop.xlane.xlu0 %583
    %v585 = vsel %vm539, %v581, 0.0
    %586 = vadd.xlane.f32.xlu0 %v585
    %v587 = vpop.xlane.xlu0 %586
    %v588 = vsub.f32 %v584, %v562
    %v589 = vsub.f32 %v587, %v563
    %v590 = vmul.f32 %v398, -1.0
    %v591 = vmul.f32 %v399, -1.0
    %v592 = vmul.f32 %v467, 0.5
    %v593 = vmul.f32 %v468, 0.5
    %v594 = vadd.f32 %v590, %v592
    %v595 = vadd.f32 %v591, %v593
    %v596 = vmul.f32 %v535, 0.5
    %v597 = vmul.f32 %v536, 0.5
    %v598 = vadd.f32 %v594, %v596
    %v599 = vadd.f32 %v595, %v597
    %v600 = vmul.f32 %v588, 2.0
    %v601 = vmul.f32 %v589, 2.0
    %v602 = vsub.f32 %v598, %v600
    %v603 = vsub.f32 %v599, %v601
    %vm604 = vcmask 7168
    %v605 = vsel %vm604, %v602, %v398
    %v606 = vsel %vm604, %v603, %v399
    %vm607 = vcmask 15360
    %v608 = vsel %vm607, %v605, %v467
    %v609 = vsel %vm607, %v606, %v468
    %vm610 = vcmask 23552
    %v611 = vsel %vm610, %v608, %v535
    %v612 = vsel %vm610, %v609, %v536
    %vm613 = vcmask 31744
    %v614 = vsel %vm613, %v611, %v588
    %v615 = vsel %vm613, %v612, %v589
    %616 = vxpose.xlu0.b32.start [1/16] %v614, 128
    %617 = vxpose.xlu0.b32.cont [2/16] %v615, 128
    %618 = vxpose.xlu0.b32.cont [3/16] 0.0, 128
    %619 = vxpose.xlu0.b32.cont [4/16] 0.0, 128
    %620 = vxpose.xlu0.b32.cont [5/16] 0.0, 128
    %621 = vxpose.xlu0.b32.cont [6/16] 0.0, 128
    %622 = vxpose.xlu0.b32.cont [7/16] 0.0, 128
    %623 = vxpose.xlu0.b32.cont [8/16] 0.0, 128
    %624 = vxpose.xlu0.b32.cont [9/16] 0.0, 128
    %625 = vxpose.xlu0.b32.cont [10/16] 0.0, 128
    %626 = vxpose.xlu0.b32.cont [11/16] 0.0, 128
    %627 = vxpose.xlu0.b32.cont [12/16] 0.0, 128
    %628 = vxpose.xlu0.b32.cont [13/16] 0.0, 128
    %629 = vxpose.xlu0.b32.cont [14/16] 0.0, 128
    %630 = vxpose.xlu0.b32.cont [15/16] 0.0, 128
    %631 = vxpose.xlu0.b32.end [16/16] 0.0, 128
    %v632 = vpop.trf.xlu0
    %v633 = vpop.trf.xlu0
    %v634 = vpop.trf.xlu0
    %v635 = vpop.trf.xlu0
    %v636 = vpop.trf.xlu0
    %v637 = vpop.trf.xlu0
    %v638 = vpop.trf.xlu0
    %v639 = vpop.trf.xlu0
    %v640 = vpop.trf.xlu0
    %v641 = vpop.trf.xlu0
    %v642 = vpop.trf.xlu0
    %v643 = vpop.trf.xlu0
    %v644 = vpop.trf.xlu0
    %v645 = vpop.trf.xlu0
    %v646 = vpop.trf.xlu0
    %v647 = vpop.trf.xlu0
    %vm648 = vcmask 126976
    %649 = vst.msk [vmem:[#allocation22] sm:$0x1f] %vm648, %v632
    // Predicated region
    $region110: #{tpu_custom_call.1} parent=1 // pred_check
      _
    $region111: #{tpu_custom_call.1} parent=1 // pred_check_branch
      %651 = sbr.rel (0) target = $region113
    $region112: #{tpu_custom_call.1} parent=1 // pred_region
      %s653 = ssub.s32 128, 128
      %654 = vsyncadd [#allocation4], %s653
      %s656 = sshll.u32 [#allocation22], 4
      %s657 = int_to_ptr.vmem [resolvable:$true] %s656
      %659 = dma.vmem_to_hbm [thread:$0]  %s657, 128, %s15, [#allocation4]
    $region113: #{tpu_custom_call.1} parent=1 // pred_fallthru
      _
    // Predicated region
    $region114: #{tpu_custom_call.1} parent=1 // pred_check
      _
    $region115: #{tpu_custom_call.1} parent=1 // pred_check_branch
      %661 = sbr.rel (0) target = $region117
    $region116: #{tpu_custom_call.1} parent=1 // pred_region
      %662 = dma.done [#allocation4], 128
    $region117: #{tpu_custom_call.1} parent=1 // pred_fallthru
      _
    %663 = vsyncpa [#allocation3], 1
    %664 = vsyncpa [#allocation6], 1
    %665 = vsyncpa [#allocation9], 1
    %666 = vsyncpa [#allocation12], 1
    %667 = vsyncpa [#allocation15], 1
    %668 = vsyncpa [#allocation18], 1
    %669 = vsyncpa [#allocation21], 1
    %670 = vsyncpa [#allocation4], 1

</llo_original>
